<compile_context>
chip_gen: v7x
topology: tpu7x:2x2x1
jax: 0.10.0
libtpu: 0.0.40
codegen_flags: <defaults>
</compile_context>

<pallas_src>
import functools

import numpy as np
import jax
import jax.numpy as jnp
from jax import lax
from jax.experimental import pallas as pl
from jax.experimental.pallas import tpu as pltpu


def _gcn_pool_kernel(x_ref, adj_ref, bio_ref, w_ref, bias_ref, out_ref, *,
                     graph_sizes, k, f0, h1_dim, h2_dim, w2_row0):
    """Fused: 2x DenseGCNConv + ELU + concat(bio) + per-graph first-k pooling.

    out_ref: [B, k * (h2_dim + bio_dim)]  -- lane-dense, written with ONE store.
    """
    n = x_ref.shape[0]

    x = x_ref[...]                                   # [N, F0]  f32
    adj = adj_ref[...]                               # [N, N]   bf16 ({-1,0,+1}, exact)
    bio = bio_ref[...]                               # [N, bio] f32
    bio_dim = bio.shape[1]

    # Packed parameters (static, sublane/lane-aligned slices).
    w1 = w_ref[0:f0, 0:h1_dim]                       # [F0, H1]
    w2 = w_ref[w2_row0:w2_row0 + h1_dim, 0:h2_dim]   # [H1, H2]
    b1 = bias_ref[:, 0:h1_dim]                       # [1, H1]
    b2 = bias_ref[:, h1_dim:h1_dim + h2_dim]         # [1, H2]

    # DenseGCNConv normalization folded into row scalings (no norm_adj tensor):
    #   deg = clamp(sum(A,-1) + 1, min=1),  d = deg^-1/2
    # f32-accumulated reduce of the bf16 adjacency is exact for {-1,0,+1}.
    deg = jnp.sum(adj, axis=-1, keepdims=True, dtype=jnp.float32) + 1.0
    deg = jnp.maximum(deg, 1.0)
    d = lax.rsqrt(deg)                               # [N, 1]
    d2 = d * d                                       # [N, 1]

    # Hoist the [N,1] -> [N,width] lane-broadcasts once per distinct width
    # (JAX does not CSE broadcast_in_dim; reused by both norm_mm calls).
    _bcast = {}

    def _dscales(width):
        if width not in _bcast:
            _bcast[width] = (jnp.broadcast_to(d, (n, width)),
                             jnp.broadcast_to(d2, (n, width)))
        return _bcast[width]

    def norm_mm(y):
        # (D^-1/2 (A+I) D^-1/2) @ y  ==  d*(A @ (d*y)) + (d*d)*y
        db, d2b = _dscales(y.shape[1])
        dy = (db * y).astype(jnp.bfloat16)           # bf16 MXU feed, f32 accumulation
        return db * jnp.dot(adj, dy, preferred_element_type=jnp.float32) + d2b * y

    # layer 1: norm_adj @ (X @ W1) + b1, then ELU(alpha=1).
    # X is one-hot, so X@W1 is effectively a row gather of W1; keeping it as a
    # tiny f32 matmul is free (MXU slack) and avoids an in-kernel gather.
    xw1 = jnp.dot(x, w1, preferred_element_type=jnp.float32)
    h1 = norm_mm(xw1) + b1
    # safe ELU: never evaluates exp on the (discarded) positive branch
    h1 = jnp.where(h1 > 0.0, h1, jnp.exp(jnp.minimum(h1, 0.0)) - 1.0)

    # layer 2: norm_adj @ (H1 @ W2) + b2
    hw2 = jnp.dot(h1, w2, preferred_element_type=jnp.float32)
    h2 = norm_mm(hw2) + b2                           # [N, H2]

    cm = jnp.concatenate([h2, bio], axis=1)          # [N, total_dim]
    total_dim = h2_dim + bio_dim

    # Fused "sort"-pooling (the module takes the FIRST min(k, size) rows, no
    # sort): assemble the pooled batch fully in registers (static slices +
    # lane concat), then write it with ONE unmasked, lane-dense store.
    rows = []
    off = 0
    for size in graph_sizes:
        kk = min(k, size)
        pieces = [cm[off + i:off + i + 1, :] for i in range(kk)]
        if kk < k:
            pieces += [jnp.zeros((1, total_dim), jnp.float32)] * (k - kk)
        rows.append(jnp.concatenate(pieces, axis=1))  # [1, k*total_dim]
        off += size
    out_ref[...] = jnp.concatenate(rows, axis=0)      # [B, k*total_dim]


def gcn_forward_pallas(node_feat, bio_feat, adj, graph_sizes, k, params):
    """Full forward: GCN layers + concat + first-k pooling in one pallas_call."""
    w1, b1, w2, b2 = params
    f0, h1_dim = w1.shape
    h2_dim = w2.shape[1]
    bio_dim = bio_feat.shape[1]
    total_dim = h2_dim + bio_dim
    batch = len(graph_sizes)

    # entries are exactly {-1, 0, +1} -> bf16 is exact; halves adjacency DMA bytes
    adj_bf16 = adj.astype(jnp.bfloat16)

    # Pack parameters into one weight slab + one bias row (5 input DMAs instead
    # of 7 -- at this size the kernel is launch/DMA-descriptor bound).  In a
    # real model this packing happens once at init, not per call.
    f0_pad = ((f0 + 7) // 8) * 8                 # sublane-aligned start for W2
    hmax = max(h1_dim, h2_dim)
    w_cat = jnp.zeros((f0_pad + h1_dim, hmax), jnp.float32)
    w_cat = w_cat.at[0:f0, 0:h1_dim].set(w1)
    w_cat = w_cat.at[f0_pad:f0_pad + h1_dim, 0:h2_dim].set(w2)
    bias_cat = jnp.concatenate(
        [b1.reshape(1, h1_dim), b2.reshape(1, h2_dim)], axis=1)

    kernel = functools.partial(
        _gcn_pool_kernel,
        graph_sizes=tuple(int(s) for s in graph_sizes),
        k=int(k), f0=int(f0), h1_dim=int(h1_dim), h2_dim=int(h2_dim),
        w2_row0=int(f0_pad))

    vmem = pl.BlockSpec(memory_space=pltpu.MemorySpace.VMEM)
    # Single full-array block: the whole problem (N=24) fits trivially in VMEM.
    # TODO(synk): large-N path -- add a grid with a leading "parallel" axis over
    # node-row blocks (uses both v7x TensorCores) and a trailing "arbitrary"
    # reduction axis over the adjacency contraction; size the adjacency row
    # tile per generation (v7x: 64 MiB VMEM with double-buffering => roughly
    # half the v5e/v6e tile; set pltpu.CompilerParams(vmem_limit_bytes=...)),
    # and ship the adjacency as int8 on v5e/v6e (exact for {-1,0,+1}) to halve
    # HBM bytes again.
    out = pl.pallas_call(
        kernel,
        out_shape=jax.ShapeDtypeStruct((batch, k * total_dim), jnp.float32),
        in_specs=[vmem] * 5,
        out_specs=vmem,
    )(node_feat, adj_bf16, bio_feat, w_cat, bias_cat)
    return out


# ---------------- pure-JAX reference (matches the PyTorch module) -------------

def _sort_pooling_ref(cur_message, graph_sizes, k):
    total_dim = cur_message.shape[1]
    outs = []
    accum = 0
    for size in graph_sizes:
        kk = min(k, size)
        sg = cur_message[accum:accum + kk]
        if kk < k:
            sg = jnp.concatenate(
                [sg, jnp.zeros((k - kk, total_dim), cur_message.dtype)], axis=0)
        outs.append(sg)
        accum += size
    batch = jnp.stack(outs, axis=0)
    return batch.reshape(len(graph_sizes), k * total_dim)


def gcn_forward_ref(node_feat, bio_feat, adj, graph_sizes, k, params):
    w1, b1, w2, b2 = params
    n = adj.shape[0]
    adj_loop = adj + jnp.eye(n, dtype=adj.dtype)
    deg = jnp.clip(jnp.sum(adj_loop, axis=-1, keepdims=True), 1.0, None)
    d = deg ** -0.5
    norm_adj = d * adj_loop * d.T
    h1 = norm_adj @ (node_feat @ w1) + b1
    h1 = jnp.where(h1 > 0.0, h1, jnp.exp(h1) - 1.0)
    h2 = norm_adj @ (h1 @ w2) + b2
    cur = jnp.concatenate([h2, bio_feat], axis=1)
    return _sort_pooling_ref(cur, graph_sizes, k)


def glorot(key, shape):
    fan_in, fan_out = shape
    limit = float(np.sqrt(6.0 / (fan_in + fan_out)))
    return jax.random.uniform(key, shape, jnp.float32, -limit, limit)


if __name__ == "__main__":
    # small shapes consistent with the module
    num_node_feats = 8          # one-hot node-label dim (max_n + 1)
    hidden_dim = [16, 16]
    bio_dim = 16
    k = 6
    graph_sizes = [10, 14]      # batch of 2 graphs
    N = sum(graph_sizes)

    key = jax.random.PRNGKey(0)
    k_lab, k_bio, k_adj, k_w1, k_w2 = jax.random.split(key, 5)

    # node features: one-hot node labels
    labels = jax.random.randint(k_lab, (N,), 0, num_node_feats)
    node_feat = jax.nn.one_hot(labels, num_node_feats, dtype=jnp.float32)

    # per-node bio features
    bio_feat = jax.random.normal(k_bio, (N, bio_dim), dtype=jnp.float32)

    # signed symmetric block-diagonal adjacency (+1 / -1 edges, zero diagonal)
    raw = jax.random.randint(k_adj, (N, N), -1, 2).astype(jnp.float32)
    block_mask = np.zeros((N, N), np.float32)
    off = 0
    for s in graph_sizes:
        block_mask[off:off + s, off:off + s] = 1.0
        off += s
    upper = jnp.triu(raw * jnp.asarray(block_mask), 1)
    adj = upper + upper.T

    # guard the bf16 adjacency shipping: exact only because edges are {-1,0,+1}
    assert np.array_equal(
        np.asarray(adj, dtype=np.float32),
        np.asarray(adj.astype(jnp.bfloat16), dtype=np.float32)), \
        "adjacency must be exactly representable in bf16 ({-1,0,+1} edges)"

    # deterministic parameter init (glorot weights, zero biases)
    w1 = glorot(k_w1, (num_node_feats, hidden_dim[0]))
    b1 = jnp.zeros((1, hidden_dim[0]), jnp.float32)
    w2 = glorot(k_w2, (hidden_dim[0], hidden_dim[1]))
    b2 = jnp.zeros((1, hidden_dim[1]), jnp.float32)
    params = (w1, b1, w2, b2)

    out = gcn_forward_pallas(node_feat, bio_feat, adj, graph_sizes, k, params)
    out = jax.block_until_ready(out)

    ref = jax.block_until_ready(
        gcn_forward_ref(node_feat, bio_feat, adj, graph_sizes, k, params))

    assert out.shape == (len(graph_sizes), k * (hidden_dim[1] + bio_dim)), out.shape
    # Tolerance relaxed vs. the pure-f32 reference because the adjacency
    # matmuls feed the MXU in bf16 (f32 accumulation); observed error is a few
    # 1e-3 absolute, well within 2e-2.
    np.testing.assert_allclose(np.asarray(out), np.asarray(ref),
                               rtol=2e-2, atol=2e-2)
    print("KERNEL_OK")
</pallas_src>

<mosaic_0001>
module attributes {stable_mosaic.version = 11 : i64} {
  func.func @_gcn_pool_kernel(%arg0: memref<24x8xf32, #tpu.memory_space<vmem>>, %arg1: memref<24x24xbf16, #tpu.memory_space<vmem>>, %arg2: memref<24x16xf32, #tpu.memory_space<vmem>>, %arg3: memref<24x16xf32, #tpu.memory_space<vmem>>, %arg4: memref<1x32xf32, #tpu.memory_space<vmem>>, %arg5: memref<2x192xf32, #tpu.memory_space<vmem>>) attributes {dimension_semantics = [], scalar_prefetch = 0 : i64, scratch_operands = 0 : i64, tpu.core_type = #tpu.core_type<tc>} {
    %c0 = arith.constant 0 : index
    %c0_0 = arith.constant 0 : index
    %0 = vector.load %arg0[%c0, %c0_0] : memref<24x8xf32, #tpu.memory_space<vmem>>, vector<24x8xf32>
    %c0_1 = arith.constant 0 : index
    %c0_2 = arith.constant 0 : index
    %1 = vector.load %arg1[%c0_1, %c0_2] : memref<24x24xbf16, #tpu.memory_space<vmem>>, vector<24x24xbf16>
    %c0_3 = arith.constant 0 : index
    %c0_4 = arith.constant 0 : index
    %2 = vector.load %arg2[%c0_3, %c0_4] : memref<24x16xf32, #tpu.memory_space<vmem>>, vector<24x16xf32>
    %c0_5 = arith.constant 0 : index
    %c0_6 = arith.constant 0 : index
    %3 = vector.load %arg3[%c0_5, %c0_6] : memref<24x16xf32, #tpu.memory_space<vmem>>, vector<8x16xf32>
    %c8 = arith.constant 8 : index
    %c0_7 = arith.constant 0 : index
    %4 = vector.load %arg3[%c8, %c0_7] : memref<24x16xf32, #tpu.memory_space<vmem>>, vector<16x16xf32>
    %c0_8 = arith.constant 0 : index
    %c0_9 = arith.constant 0 : index
    %5 = vector.load %arg4[%c0_8, %c0_9] : memref<1x32xf32, #tpu.memory_space<vmem>>, vector<1x16xf32>
    %c0_10 = arith.constant 0 : index
    %c16 = arith.constant 16 : index
    %6 = vector.load %arg4[%c0_10, %c16] : memref<1x32xf32, #tpu.memory_space<vmem>>, vector<1x16xf32>
    %7 = arith.extf %1 : vector<24x24xbf16> to vector<24x24xf32>
    %cst = arith.constant dense<0.000000e+00> : vector<24xf32>
    %8 = vector.multi_reduction <add>, %7, %cst [1] : vector<24x24xf32> to vector<24xf32>
    %9 = vector.shape_cast %8 : vector<24xf32> to vector<24x1xf32>
    %cst_11 = arith.constant 1.000000e+00 : f32
    %10 = vector.broadcast %cst_11 : f32 to vector<24x1xf32>
    %11 = arith.addf %9, %10 : vector<24x1xf32>
    %cst_12 = arith.constant 1.000000e+00 : f32
    %12 = vector.broadcast %cst_12 : f32 to vector<24x1xf32>
    %13 = arith.maximumf %11, %12 : vector<24x1xf32>
    %14 = math.rsqrt %13 : vector<24x1xf32>
    %15 = arith.mulf %14, %14 : vector<24x1xf32>
    %cst_13 = arith.constant dense<0.000000e+00> : vector<24x16xf32>
    %16 = tpu.matmul %0, %3, %cst_13 {dimension_numbers = #tpu.dot_dimension_numbers<[1], [0], [0], [1], [0, 0, 1, 1], [], []>} : vector<24x8xf32>, vector<8x16xf32>, vector<24x16xf32> -> vector<24x16xf32>
    %17 = vector.shape_cast %14 : vector<24x1xf32> to vector<24x1xf32>
    %18 = vector.broadcast %17 : vector<24x1xf32> to vector<24x16xf32>
    %19 = vector.shape_cast %15 : vector<24x1xf32> to vector<24x1xf32>
    %20 = vector.broadcast %19 : vector<24x1xf32> to vector<24x16xf32>
    %21 = arith.mulf %18, %16 : vector<24x16xf32>
    %22 = arith.truncf %21 : vector<24x16xf32> to vector<24x16xbf16>
    %cst_14 = arith.constant dense<0.000000e+00> : vector<24x16xf32>
    %23 = tpu.matmul %1, %22, %cst_14 {dimension_numbers = #tpu.dot_dimension_numbers<[1], [0], [0], [1], [0, 0, 1, 1], [], []>} : vector<24x24xbf16>, vector<24x16xbf16>, vector<24x16xf32> -> vector<24x16xf32>
    %24 = arith.mulf %18, %23 : vector<24x16xf32>
    %25 = arith.mulf %20, %16 : vector<24x16xf32>
    %26 = arith.addf %24, %25 : vector<24x16xf32>
    %27 = vector.broadcast %5 : vector<1x16xf32> to vector<24x16xf32>
    %28 = arith.addf %26, %27 : vector<24x16xf32>
    %cst_15 = arith.constant 0.000000e+00 : f32
    %29 = vector.broadcast %cst_15 : f32 to vector<24x16xf32>
    %30 = arith.cmpf ogt, %28, %29 : vector<24x16xf32>
    %cst_16 = arith.constant 0.000000e+00 : f32
    %31 = vector.broadcast %cst_16 : f32 to vector<24x16xf32>
    %32 = arith.minimumf %28, %31 : vector<24x16xf32>
    %33 = math.exp %32 : vector<24x16xf32>
    %cst_17 = arith.constant 1.000000e+00 : f32
    %34 = vector.broadcast %cst_17 : f32 to vector<24x16xf32>
    %35 = arith.subf %33, %34 : vector<24x16xf32>
    %36 = arith.select %30, %28, %35 : vector<24x16xi1>, vector<24x16xf32>
    %cst_18 = arith.constant dense<0.000000e+00> : vector<24x16xf32>
    %37 = tpu.matmul %36, %4, %cst_18 {dimension_numbers = #tpu.dot_dimension_numbers<[1], [0], [0], [1], [0, 0, 1, 1], [], []>} : vector<24x16xf32>, vector<16x16xf32>, vector<24x16xf32> -> vector<24x16xf32>
    %38 = arith.mulf %18, %37 : vector<24x16xf32>
    %39 = arith.truncf %38 : vector<24x16xf32> to vector<24x16xbf16>
    %cst_19 = arith.constant dense<0.000000e+00> : vector<24x16xf32>
    %40 = tpu.matmul %1, %39, %cst_19 {dimension_numbers = #tpu.dot_dimension_numbers<[1], [0], [0], [1], [0, 0, 1, 1], [], []>} : vector<24x24xbf16>, vector<24x16xbf16>, vector<24x16xf32> -> vector<24x16xf32>
    %41 = arith.mulf %18, %40 : vector<24x16xf32>
    %42 = arith.mulf %20, %37 : vector<24x16xf32>
    %43 = arith.addf %41, %42 : vector<24x16xf32>
    %44 = vector.broadcast %6 : vector<1x16xf32> to vector<24x16xf32>
    %45 = arith.addf %43, %44 : vector<24x16xf32>
    %46 = tpu.concatenate %45, %2 in 1 : vector<24x16xf32>, vector<24x16xf32> -> vector<24x32xf32>
    %47 = vector.extract_strided_slice %46 {offsets = [0, 0], sizes = [1, 32], strides = [1, 1]} : vector<24x32xf32> to vector<1x32xf32>
    %48 = vector.extract_strided_slice %46 {offsets = [1, 0], sizes = [1, 32], strides = [1, 1]} : vector<24x32xf32> to vector<1x32xf32>
    %49 = vector.extract_strided_slice %46 {offsets = [2, 0], sizes = [1, 32], strides = [1, 1]} : vector<24x32xf32> to vector<1x32xf32>
    %50 = vector.extract_strided_slice %46 {offsets = [3, 0], sizes = [1, 32], strides = [1, 1]} : vector<24x32xf32> to vector<1x32xf32>
    %51 = vector.extract_strided_slice %46 {offsets = [4, 0], sizes = [1, 32], strides = [1, 1]} : vector<24x32xf32> to vector<1x32xf32>
    %52 = vector.extract_strided_slice %46 {offsets = [5, 0], sizes = [1, 32], strides = [1, 1]} : vector<24x32xf32> to vector<1x32xf32>
    %53 = tpu.concatenate %47, %48, %49, %50, %51, %52 in 1 : vector<1x32xf32>, vector<1x32xf32>, vector<1x32xf32>, vector<1x32xf32>, vector<1x32xf32>, vector<1x32xf32> -> vector<1x192xf32>
    %54 = vector.extract_strided_slice %46 {offsets = [10, 0], sizes = [1, 32], strides = [1, 1]} : vector<24x32xf32> to vector<1x32xf32>
    %55 = vector.extract_strided_slice %46 {offsets = [11, 0], sizes = [1, 32], strides = [1, 1]} : vector<24x32xf32> to vector<1x32xf32>
    %56 = vector.extract_strided_slice %46 {offsets = [12, 0], sizes = [1, 32], strides = [1, 1]} : vector<24x32xf32> to vector<1x32xf32>
    %57 = vector.extract_strided_slice %46 {offsets = [13, 0], sizes = [1, 32], strides = [1, 1]} : vector<24x32xf32> to vector<1x32xf32>
    %58 = vector.extract_strided_slice %46 {offsets = [14, 0], sizes = [1, 32], strides = [1, 1]} : vector<24x32xf32> to vector<1x32xf32>
    %59 = vector.extract_strided_slice %46 {offsets = [15, 0], sizes = [1, 32], strides = [1, 1]} : vector<24x32xf32> to vector<1x32xf32>
    %60 = tpu.concatenate %54, %55, %56, %57, %58, %59 in 1 : vector<1x32xf32>, vector<1x32xf32>, vector<1x32xf32>, vector<1x32xf32>, vector<1x32xf32>, vector<1x32xf32> -> vector<1x192xf32>
    %61 = tpu.concatenate %53, %60 in 0 : vector<1x192xf32>, vector<1x192xf32> -> vector<2x192xf32>
    %c0_20 = arith.constant 0 : index
    %c0_21 = arith.constant 0 : index
    %62 = vector.load %arg5[%c0_20, %c0_21] : memref<2x192xf32, #tpu.memory_space<vmem>>, vector<2x192xf32>
    tpu.vector_store %arg5[%c0_20, %c0_21], %61 {strides = array<i32>} : memref<2x192xf32, #tpu.memory_space<vmem>>, vector<2x192xf32>,
    return
  }
}

</mosaic_0001>

<llo_original>
// kernel: tpu_custom_call.1
$region0: #{tpu_custom_call.1}
  #allocation0 [shape = 'u32[]', space=smem, size = 0x4, offset = 0x4, fixed_abs, tag = 'smem constant byte address 0x4 - core index']
  #allocation1 [shape = 'u32[144,128]{1,0:T(1,128)}', space=vmem, size = 0x12000, scoped, tag = 'internal scratch']
  %s0 = inlined_call_operand.vmem [shape: f32[24,8], index: 0, kind: input, shape index: {}]
  %s1 = inlined_call_operand.vmem [shape: bf16[24,24], index: 1, kind: input, shape index: {}]
  %s2 = inlined_call_operand.vmem [shape: f32[24,16], index: 2, kind: input, shape index: {}]
  %s3 = inlined_call_operand.vmem [shape: f32[24,16], index: 3, kind: input, shape index: {}]
  %s4 = inlined_call_operand.vmem [shape: f32[1,32], index: 4, kind: input, shape index: {}]
  %s5 = inlined_call_operand.hbm [shape: f32[2,192], index: 5, kind: output, shape index: {}]
  %s6 = sld [smem:[#allocation0]]
  $region30: #{tpu_custom_call.1} parent=0
    _
  %s8 = ssub.s32 1, %s6
  %s9 = scalar_select 0, %s8, %s6
  $region1: #{tpu_custom_call.1} parent=0
    #allocation2 [shape = 'u8[2048]{0}', space=vmem, size = 0x800, scoped, tag = 'output window, operand 0, single buffered']
    #allocation3 [shape = 's32[1]{0}', space=sflag, size = 0x4, scoped, tag = 'scoped memory for tpu_custom_call.1']
    %10 = vsyncpa [#allocation3], 0
    // Predicated region
    $region2: #{tpu_custom_call.1} parent=1 // pred_check
      _
    $region3: #{tpu_custom_call.1} parent=1 // pred_check_branch
      %12 = sbr.rel (0) target = $region5
    $region4: #{tpu_custom_call.1} parent=1 // pred_region
      _
    $region5: #{tpu_custom_call.1} parent=1 // pred_fallthru
      _
    // Predicated region
    $region6: #{tpu_custom_call.1} parent=1 // pred_check
      _
    $region7: #{tpu_custom_call.1} parent=1 // pred_check_branch
      %14 = sbr.rel (0) target = $region9
    $region8: #{tpu_custom_call.1} parent=1 // pred_region
      _
    $region9: #{tpu_custom_call.1} parent=1 // pred_fallthru
      _
    // Predicated region
    $region10: #{tpu_custom_call.1} parent=1 // pred_check
      _
    $region11: #{tpu_custom_call.1} parent=1 // pred_check_branch
      %16 = sbr.rel (0) target = $region13
    $region12: #{tpu_custom_call.1} parent=1 // pred_region
      _
    $region13: #{tpu_custom_call.1} parent=1 // pred_fallthru
      _
    // Predicated region
    $region14: #{tpu_custom_call.1} parent=1 // pred_check
      _
    $region15: #{tpu_custom_call.1} parent=1 // pred_check_branch
      %18 = sbr.rel (0) target = $region17
    $region16: #{tpu_custom_call.1} parent=1 // pred_region
      _
    $region17: #{tpu_custom_call.1} parent=1 // pred_fallthru
      _
    // Predicated region
    $region18: #{tpu_custom_call.1} parent=1 // pred_check
      _
    $region19: #{tpu_custom_call.1} parent=1 // pred_check_branch
      %20 = sbr.rel (0) target = $region21
    $region20: #{tpu_custom_call.1} parent=1 // pred_region
      _
    $region21: #{tpu_custom_call.1} parent=1 // pred_fallthru
      _
    %v22 = vld [vmem:[%s0] sm:$0xff]
    %v23 = vld [vmem:[%s0 + $0x8] sm:$0xff]
    %v24 = vld [vmem:[%s0 + $0x10] sm:$0xff]
    %v25 = vld [vmem:[%s1] sm:$0xf]
    %v26 = vld [vmem:[%s1 + $0x4] sm:$0xf]
    %v27 = vld [vmem:[%s1 + $0x8] sm:$0xf]
    %v28 = vld [vmem:[%s2] sm:$0xff]
    %v29 = vld [vmem:[%s2 + $0x8] sm:$0xff]
    %v30 = vld [vmem:[%s3] sm:$0xff]
    %v31 = vld [vmem:[%s3 + $0x8] sm:$0xff]
    %v32 = vld [vmem:[%s3 + $0x10] sm:$0xff]
    %v33 = vld [vmem:[%s4] sm:$0x1]
    %v34 = vunpack.c.l.bf16 %v25
    %v35 = vunpack.c.l.bf16 %v26
    %v36 = vunpack.c.l.bf16 %v27
    %vm37 = vcmask 195584
    %v38 = vsel %vm37, %v34, 0.0
    %39 = vadd.xlane.f32.xlu0 %v38
    %v40 = vpop.xlane.xlu0 %39
    %v41 = vsel %vm37, %v35, 0.0
    %42 = vadd.xlane.f32.xlu0 %v41
    %v43 = vpop.xlane.xlu0 %42
    %v44 = vsel %vm37, %v36, 0.0
    %45 = vadd.xlane.f32.xlu0 %v44
    %v46 = vpop.xlane.xlu0 %45
    %v47 = vadd.f32 %v40, 1.0
    %v48 = vadd.f32 %v43, 1.0
    %v49 = vadd.f32 %v46, 1.0
    %v50 = vmax.f32 %v47, 1.0
    %v51 = vmax.f32 %v48, 1.0
    %v52 = vmax.f32 %v49, 1.0
    %v53 = vrsqrt.pop %v50
    %v54 = vrsqrt.pop %v51
    %v55 = vrsqrt.pop %v52
    %v56 = vmul.f32 %v53, %v53
    %v57 = vmul.f32 %v54, %v54
    %v58 = vmul.f32 %v55, %v55
    %vm59 = vcmask 64512
    %v61 = vsel %vm59, %v22, 0
    %v64 = vsel %vm59, %v23, 0
    %v67 = vsel %vm59, %v24, 0
    %69 = vmatprep.subr.mxu0 0.0
    %70 = vmatpush1.msra.mxu0 %v30
    %71 = vmatprep.subr.mxu0 0.0
    %72 = vmatpush1.msra.mxu0 0.0
    %73 = vmatprep.subr.mxu0 0.0
    %74 = vmatpush1.msra.mxu0 0.0
    %75 = vmatprep.subr.mxu0 0.0
    %76 = vmatpush1.msra.mxu0 0.0
    %77 = vmatprep.subr.mxu0 0.0
    %78 = vmatpush1.msra.mxu0 0.0
    %79 = vmatprep.subr.mxu0 0.0
    %80 = vmatpush1.msra.mxu0 0.0
    %81 = vmatprep.subr.mxu0 0.0
    %82 = vmatpush1.msra.mxu0 0.0
    %83 = vmatprep.subr.mxu0 0.0
    %84 = vmatpush1.msra.mxu0 0.0
    %85 = vmatprep.subr.mxu0 0.0
    %86 = vmatpush1.msra.mxu0 0.0
    %87 = vmatprep.subr.mxu0 0.0
    %88 = vmatpush1.msra.mxu0 0.0
    %89 = vmatprep.subr.mxu0 0.0
    %90 = vmatpush1.msra.mxu0 0.0
    %91 = vmatprep.subr.mxu0 0.0
    %92 = vmatpush1.msra.mxu0 0.0
    %93 = vmatprep.subr.mxu0 0.0
    %94 = vmatpush1.msra.mxu0 0.0
    %95 = vmatprep.subr.mxu0 0.0
    %96 = vmatpush1.msra.mxu0 0.0
    %97 = vmatprep.subr.mxu0 0.0
    %98 = vmatpush1.msra.mxu0 0.0
    %99 = vmatprep.subr.mxu0 0.0
    %100 = vmatpush1.msra.mxu0 0.0
    %101 = vmatprep.subr.mxu0 0.0
    %102 = vmatpush1.msra.mxu0 0.0
    %103 = vmatprep.subr.mxu0 0.0
    %104 = vmatpush1.msra.mxu0 0.0
    %105 = vmatprep.subr.mxu0 0.0
    %106 = vmatpush1.msra.mxu0 0.0
    %107 = vmatprep.subr.mxu0 0.0
    %108 = vmatpush1.msra.mxu0 0.0
    %109 = vmatprep.subr.mxu0 0.0
    %110 = vmatpush1.msra.mxu0 0.0
    %111 = vmatprep.subr.mxu0 0.0
    %112 = vmatpush1.msra.mxu0 0.0
    %113 = vmatprep.subr.mxu0 0.0
    %114 = vmatpush1.msra.mxu0 0.0
    %115 = vmatprep.subr.mxu0 0.0
    %116 = vmatpush1.msra.mxu0 0.0
    %117 = vmatprep.subr.mxu0 0.0
    %118 = vmatpush1.msra.mxu0 0.0
    %119 = vmatprep.subr.mxu0 0.0
    %120 = vmatpush1.msra.mxu0 0.0
    %121 = vmatprep.subr.mxu0 0.0
    %122 = vmatpush1.msra.mxu0 0.0
    %123 = vmatprep.subr.mxu0 0.0
    %124 = vmatpush1.msra.mxu0 0.0
    %125 = vmatprep.subr.mxu0 0.0
    %126 = vmatpush1.msra.mxu0 0.0
    %127 = vmatprep.subr.mxu0 0.0
    %128 = vmatpush1.msra.mxu0 0.0
    %129 = vmatprep.subr.mxu0 0.0
    %130 = vmatpush1.msra.mxu0 0.0
    %131 = vmatprep.subr.mxu0 0.0
    %132 = vmatpush1.msra.mxu0 0.0
    %133 = vmatprep.mubr.f32.mxu0 0.0
    %134 = vmatmul.mubr.f32.gmra.mrb[0].mxu0 %v61
    %v135 = vpop.f32.mrb[0].mxu0
    %v136 = vadd.f32 0.0, %v135
    %v137 = vpop.f32.mrb[0].mxu0
    %138 = vmatprep.mubr.f32.mxu0 0.0
    %139 = vmatmul.mubr.f32.gmra.mrb[0].mxu0 %v64
    %v140 = vpop.f32.mrb[0].mxu0
    %v141 = vadd.f32 0.0, %v140
    %v142 = vpop.f32.mrb[0].mxu0
    %143 = vmatprep.mubr.f32.mxu0 0.0
    %144 = vmatmul.mubr.f32.gmra.mrb[0].mxu0 %v67
    %v145 = vpop.f32.mrb[0].mxu0
    %v146 = vadd.f32 0.0, %v145
    %v147 = vpop.f32.mrb[0].mxu0
    %148 = vdwg.mxu0
    %v149 = vmul.f32 %v53, %v136
    %v150 = vmul.f32 %v54, %v141
    %v151 = vmul.f32 %v55, %v146
    %v152 = vpack.c.bf16 %v150, %v149
    %v153 = vpack.c.bf16 %v151, %v151
    %v157 = vunpack.c.l.b16 %v25
    %v158 = vunpack.c.l.b16 %v26
    %v159 = vunpack.c.l.b16 %v27
    %v160 = vpack.c.b16 %v158, %v157
    %v161 = vpack.c.b16 %v159, %v159
    %v163 = vsel %vm37, %v160, 0
    %v166 = vsel %vm37, %v161, 0
    %vm168 = vcmask 1043456
    %v170 = vsel %vm168, %v153, 0
    %172 = vmatprep.subr.bf16.mxu0 0
    %173 = vmatpush1.bf16.msra.mxu0 %v152
    %174 = vmatprep.subr.bf16.mxu0 0
    %175 = vmatpush1.bf16.msra.mxu0 %v170
    %176 = vmatprep.subr.bf16.mxu0 0
    %177 = vmatpush1.bf16.msra.mxu0 0
    %178 = vmatprep.subr.bf16.mxu0 0
    %179 = vmatpush1.bf16.msra.mxu0 0
    %180 = vmatprep.subr.bf16.mxu0 0
    %181 = vmatpush1.bf16.msra.mxu0 0
    %182 = vmatprep.subr.bf16.mxu0 0
    %183 = vmatpush1.bf16.msra.mxu0 0
    %184 = vmatprep.subr.bf16.mxu0 0
    %185 = vmatpush1.bf16.msra.mxu0 0
    %186 = vmatprep.subr.bf16.mxu0 0
    %187 = vmatpush1.bf16.msra.mxu0 0
    %188 = vmatprep.subr.bf16.mxu0 0
    %189 = vmatpush1.bf16.msra.mxu0 0
    %190 = vmatprep.subr.bf16.mxu0 0
    %191 = vmatpush1.bf16.msra.mxu0 0
    %192 = vmatprep.subr.bf16.mxu0 0
    %193 = vmatpush1.bf16.msra.mxu0 0
    %194 = vmatprep.subr.bf16.mxu0 0
    %195 = vmatpush1.bf16.msra.mxu0 0
    %196 = vmatprep.subr.bf16.mxu0 0
    %197 = vmatpush1.bf16.msra.mxu0 0
    %198 = vmatprep.subr.bf16.mxu0 0
    %199 = vmatpush1.bf16.msra.mxu0 0
    %200 = vmatprep.subr.bf16.mxu0 0
    %201 = vmatpush1.bf16.msra.mxu0 0
    %202 = vmatprep.subr.bf16.mxu0 0
    %203 = vmatpush1.bf16.msra.mxu0 0
    %204 = vmatprep.mubr.bf16.mxu0 0
    %205 = vmatmul.mubr.bf16.gmra.mrb[0].mxu0 %v163
    %v206 = vpop.f32.mrb[0].mxu0
    %v207 = vadd.f32 0.0, %v206
    %v208 = vpop.f32.mrb[0].mxu0
    %v209 = vpop.f32.mrb[0].mxu0
    %v210 = vadd.f32 0.0, %v209
    %v211 = vpop.f32.mrb[0].mxu0
    %212 = vmatprep.mubr.bf16.mxu0 0
    %213 = vmatmul.mubr.bf16.gmra.mrb[0].mxu0 %v166
    %v214 = vpop.f32.mrb[0].mxu0
    %v215 = vadd.f32 0.0, %v214
    %v216 = vpop.f32.mrb[0].mxu0
    %v217 = vpop.f32.mrb[0].mxu0
    %v218 = vpop.f32.mrb[0].mxu0
    %219 = vdwg.mxu0
    %v220 = vmul.f32 %v53, %v207
    %v221 = vmul.f32 %v54, %v210
    %v222 = vmul.f32 %v55, %v215
    %v223 = vmul.f32 %v56, %v136
    %v224 = vmul.f32 %v57, %v141
    %v225 = vmul.f32 %v58, %v146
    %v226 = vadd.f32 %v220, %v223
    %v227 = vadd.f32 %v221, %v224
    %v228 = vadd.f32 %v222, %v225
    %v230 = vlaneseq
    %v231 = vshrl.u32 %v230, 7
    %v232 = vsub.s32 0, %v231
    %v233 = vrot.slane %v33, %v232
    %v235 = vadd.f32 %v226, %v233
    %v236 = vadd.f32 %v227, %v233
    %v237 = vadd.f32 %v228, %v233
    %vm238 = vcmp.gt.f32.partialorder %v235, 0.0
    %vm239 = vcmp.gt.f32.partialorder %v236, 0.0
    %vm240 = vcmp.gt.f32.partialorder %v237, 0.0
    %v241 = vmin.f32 %v235, 0.0
    %v242 = vmin.f32 %v236, 0.0
    %v243 = vmin.f32 %v237, 0.0
    %v244 = vmul.f32 %v241, 1.442695
    %v245 = vpow.pop %v244
    %v246 = vmul.f32 %v242, 1.442695
    %v247 = vpow.pop %v246
    %v248 = vmul.f32 %v243, 1.442695
    %v249 = vpow.pop %v248
    %v250 = vsub.f32 %v245, 1.0
    %v251 = vsub.f32 %v247, 1.0
    %v252 = vsub.f32 %v249, 1.0
    %v253 = vsel %vm238, %v235, %v250
    %v254 = vsel %vm239, %v236, %v251
    %v255 = vsel %vm240, %v237, %v252
    %vm256 = vcmask 130048
    %v258 = vsel %vm256, %v253, 0
    %v261 = vsel %vm256, %v254, 0
    %v264 = vsel %vm256, %v255, 0
    %266 = vmatprep.subr.mxu0 0.0
    %267 = vmatpush1.msra.mxu0 %v31
    %268 = vmatprep.subr.mxu0 0.0
    %269 = vmatpush1.msra.mxu0 %v32
    %270 = vmatprep.subr.mxu0 0.0
    %271 = vmatpush1.msra.mxu0 0.0
    %272 = vmatprep.subr.mxu0 0.0
    %273 = vmatpush1.msra.mxu0 0.0
    %274 = vmatprep.subr.mxu0 0.0
    %275 = vmatpush1.msra.mxu0 0.0
    %276 = vmatprep.subr.mxu0 0.0
    %277 = vmatpush1.msra.mxu0 0.0
    %278 = vmatprep.subr.mxu0 0.0
    %279 = vmatpush1.msra.mxu0 0.0
    %280 = vmatprep.subr.mxu0 0.0
    %281 = vmatpush1.msra.mxu0 0.0
    %282 = vmatprep.subr.mxu0 0.0
    %283 = vmatpush1.msra.mxu0 0.0
    %284 = vmatprep.subr.mxu0 0.0
    %285 = vmatpush1.msra.mxu0 0.0
    %286 = vmatprep.subr.mxu0 0.0
    %287 = vmatpush1.msra.mxu0 0.0
    %288 = vmatprep.subr.mxu0 0.0
    %289 = vmatpush1.msra.mxu0 0.0
    %290 = vmatprep.subr.mxu0 0.0
    %291 = vmatpush1.msra.mxu0 0.0
    %292 = vmatprep.subr.mxu0 0.0
    %293 = vmatpush1.msra.mxu0 0.0
    %294 = vmatprep.subr.mxu0 0.0
    %295 = vmatpush1.msra.mxu0 0.0
    %296 = vmatprep.subr.mxu0 0.0
    %297 = vmatpush1.msra.mxu0 0.0
    %298 = vmatprep.subr.mxu0 0.0
    %299 = vmatpush1.msra.mxu0 0.0
    %300 = vmatprep.subr.mxu0 0.0
    %301 = vmatpush1.msra.mxu0 0.0
    %302 = vmatprep.subr.mxu0 0.0
    %303 = vmatpush1.msra.mxu0 0.0
    %304 = vmatprep.subr.mxu0 0.0
    %305 = vmatpush1.msra.mxu0 0.0
    %306 = vmatprep.subr.mxu0 0.0
    %307 = vmatpush1.msra.mxu0 0.0
    %308 = vmatprep.subr.mxu0 0.0
    %309 = vmatpush1.msra.mxu0 0.0
    %310 = vmatprep.subr.mxu0 0.0
    %311 = vmatpush1.msra.mxu0 0.0
    %312 = vmatprep.subr.mxu0 0.0
    %313 = vmatpush1.msra.mxu0 0.0
    %314 = vmatprep.subr.mxu0 0.0
    %315 = vmatpush1.msra.mxu0 0.0
    %316 = vmatprep.subr.mxu0 0.0
    %317 = vmatpush1.msra.mxu0 0.0
    %318 = vmatprep.subr.mxu0 0.0
    %319 = vmatpush1.msra.mxu0 0.0
    %320 = vmatprep.subr.mxu0 0.0
    %321 = vmatpush1.msra.mxu0 0.0
    %322 = vmatprep.subr.mxu0 0.0
    %323 = vmatpush1.msra.mxu0 0.0
    %324 = vmatprep.subr.mxu0 0.0
    %325 = vmatpush1.msra.mxu0 0.0
    %326 = vmatprep.subr.mxu0 0.0
    %327 = vmatpush1.msra.mxu0 0.0
    %328 = vmatprep.subr.mxu0 0.0
    %329 = vmatpush1.msra.mxu0 0.0
    %330 = vmatprep.mubr.f32.mxu0 0.0
    %331 = vmatmul.mubr.f32.gmra.mrb[0].mxu0 %v258
    %v332 = vpop.f32.mrb[0].mxu0
    %v333 = vadd.f32 0.0, %v332
    %v334 = vpop.f32.mrb[0].mxu0
    %335 = vmatprep.mubr.f32.mxu0 0.0
    %336 = vmatmul.mubr.f32.gmra.mrb[0].mxu0 %v261
    %v337 = vpop.f32.mrb[0].mxu0
    %v338 = vadd.f32 0.0, %v337
    %v339 = vpop.f32.mrb[0].mxu0
    %340 = vmatprep.mubr.f32.mxu0 0.0
    %341 = vmatmul.mubr.f32.gmra.mrb[0].mxu0 %v264
    %v342 = vpop.f32.mrb[0].mxu0
    %v343 = vadd.f32 0.0, %v342
    %v344 = vpop.f32.mrb[0].mxu0
    %345 = vdwg.mxu0
    %v346 = vmul.f32 %v53, %v333
    %v347 = vmul.f32 %v54, %v338
    %v348 = vmul.f32 %v55, %v343
    %v349 = vpack.c.bf16 %v347, %v346
    %v350 = vpack.c.bf16 %v348, %v348
    %v352 = vsel %vm168, %v350, 0
    %354 = vmatprep.subr.bf16.mxu0 0
    %355 = vmatpush1.bf16.msra.mxu0 %v349
    %356 = vmatprep.subr.bf16.mxu0 0
    %357 = vmatpush1.bf16.msra.mxu0 %v352
    %358 = vmatprep.subr.bf16.mxu0 0
    %359 = vmatpush1.bf16.msra.mxu0 0
    %360 = vmatprep.subr.bf16.mxu0 0
    %361 = vmatpush1.bf16.msra.mxu0 0
    %362 = vmatprep.subr.bf16.mxu0 0
    %363 = vmatpush1.bf16.msra.mxu0 0
    %364 = vmatprep.subr.bf16.mxu0 0
    %365 = vmatpush1.bf16.msra.mxu0 0
    %366 = vmatprep.subr.bf16.mxu0 0
    %367 = vmatpush1.bf16.msra.mxu0 0
    %368 = vmatprep.subr.bf16.mxu0 0
    %369 = vmatpush1.bf16.msra.mxu0 0
    %370 = vmatprep.subr.bf16.mxu0 0
    %371 = vmatpush1.bf16.msra.mxu0 0
    %372 = vmatprep.subr.bf16.mxu0 0
    %373 = vmatpush1.bf16.msra.mxu0 0
    %374 = vmatprep.subr.bf16.mxu0 0
    %375 = vmatpush1.bf16.msra.mxu0 0
    %376 = vmatprep.subr.bf16.mxu0 0
    %377 = vmatpush1.bf16.msra.mxu0 0
    %378 = vmatprep.subr.bf16.mxu0 0
    %379 = vmatpush1.bf16.msra.mxu0 0
    %380 = vmatprep.subr.bf16.mxu0 0
    %381 = vmatpush1.bf16.msra.mxu0 0
    %382 = vmatprep.subr.bf16.mxu0 0
    %383 = vmatpush1.bf16.msra.mxu0 0
    %384 = vmatprep.subr.bf16.mxu0 0
    %385 = vmatpush1.bf16.msra.mxu0 0
    %386 = vmatprep.mubr.bf16.mxu0 0
    %387 = vmatmul.mubr.bf16.gmra.mrb[0].mxu0 %v163
    %v388 = vpop.f32.mrb[0].mxu0
    %v389 = vadd.f32 0.0, %v388
    %v390 = vpop.f32.mrb[0].mxu0
    %v391 = vpop.f32.mrb[0].mxu0
    %v392 = vadd.f32 0.0, %v391
    %v393 = vpop.f32.mrb[0].mxu0
    %394 = vmatprep.mubr.bf16.mxu0 0
    %395 = vmatmul.mubr.bf16.gmra.mrb[0].mxu0 %v166
    %v396 = vpop.f32.mrb[0].mxu0
    %v397 = vpop.f32.mrb[0].mxu0
    %v398 = vpop.f32.mrb[0].mxu0
    %v399 = vpop.f32.mrb[0].mxu0
    %400 = vdwg.mxu0
    %v401 = vmul.f32 %v53, %v389
    %v402 = vmul.f32 %v54, %v392
    %v403 = vmul.f32 %v56, %v333
    %v404 = vmul.f32 %v57, %v338
    %v405 = vadd.f32 %v401, %v403
    %v406 = vadd.f32 %v402, %v404
    %407 = vrot.lane.b32.xlu0 %v233, 112
    %v408 = vpop.permute.xlu0 %407
    %v410 = vadd.f32 %v405, %v408
    %v411 = vadd.f32 %v406, %v408
    %414 = vrot.lane.b32.xlu0 %v28, 16
    %v415 = vpop.permute.xlu0 %414
    %416 = vrot.lane.b32.xlu0 %v29, 16
    %v417 = vpop.permute.xlu0 %416
    %v420 = vsel %vm256, %v410, %v415
    %v421 = vsel %vm256, %v411, %v417
    %v423 = vrot.slane %v420, 1
    %424 = vrot.lane.b32.xlu0 %v423, 32
    %v425 = vpop.permute.xlu0 %424
    %v427 = vrot.slane %v420, 2
    %428 = vrot.lane.b32.xlu0 %v427, 64
    %v429 = vpop.permute.xlu0 %428
    %v431 = vrot.slane %v420, 3
    %432 = vrot.lane.b32.xlu0 %v431, 96
    %v433 = vpop.permute.xlu0 %432
    %v435 = vrot.slane %v420, 4
    %v437 = vrot.slane %v420, 5
    %438 = vrot.lane.b32.xlu0 %v437, 32
    %v439 = vpop.permute.xlu0 %438
    %vm441 = vcmask 261120
    %v442 = vsel %vm441, %v420, %v425
    %vm443 = vcmask 523264
    %v444 = vsel %vm443, %v442, %v429
    %vm445 = vcmask 785408
    %v446 = vsel %vm445, %v444, %v433
    %v447 = vsel %vm441, %v435, %v439
    %v449 = vrot.slane %v421, 1
    %450 = vrot.lane.b32.xlu0 %v449, 32
    %v451 = vpop.permute.xlu0 %450
    %v453 = vrot.slane %v421, 2
    %454 = vrot.lane.b32.xlu0 %v453, 64
    %v455 = vpop.permute.xlu0 %454
    %v457 = vrot.slane %v421, 3
    %458 = vrot.lane.b32.xlu0 %v457, 96
    %v459 = vpop.permute.xlu0 %458
    %v461 = vrot.slane %v421, 4
    %v463 = vrot.slane %v421, 5
    %464 = vrot.lane.b32.xlu0 %v463, 32
    %v465 = vpop.permute.xlu0 %464
    %v467 = vsel %vm441, %v421, %v451
    %v468 = vsel %vm443, %v467, %v455
    %v469 = vsel %vm445, %v468, %v459
    %v470 = vsel %vm441, %v461, %v465
    %v473 = vrot.slane %v469, 1
    %v474 = vrot.slane %v470, 1
    %vm477 = vcmask 1040384
    %v478 = vsel %vm477, %v446, %v473
    %v479 = vsel %vm477, %v447, %v474
    %v482 = vcombine.low %v478, %v479
    %v484 = vunpack.c.l.s4 1983009808
    %v485 = vunpack.c.0.s8 %v484
    %v486 = vlaneseq
    %v487 = vshrl.u32 %v486, 7
    %v488 = vsub.s32 %v485, %v487
    %v489 = vrot.slane %v482, %v488
    %vm491 = vcmask 1041408
    %vm492 = vcmask 519170
    %vm493 = vmor %vm492, %vm491
    %494 = vst.msk [vmem:[#allocation2] sm:$0xf] %vm493, %v489
    // Predicated region
    $region22: #{tpu_custom_call.1} parent=1 // pred_check
      _
    $region23: #{tpu_custom_call.1} parent=1 // pred_check_branch
      %496 = sbr.rel (0) target = $region25
    $region24: #{tpu_custom_call.1} parent=1 // pred_region
      %s498 = ssub.s32 64, 64
      %499 = vsyncadd [#allocation3], %s498
      %s501 = sshll.u32 [#allocation2], 4
      %s502 = int_to_ptr.vmem [resolvable:$true] %s501
      %504 = dma.vmem_to_hbm [thread:$0]  %s502, 64, %s5, [#allocation3]
    $region25: #{tpu_custom_call.1} parent=1 // pred_fallthru
      _
    // Predicated region
    $region26: #{tpu_custom_call.1} parent=1 // pred_check
      _
    $region27: #{tpu_custom_call.1} parent=1 // pred_check_branch
      %506 = sbr.rel (0) target = $region29
    $region28: #{tpu_custom_call.1} parent=1 // pred_region
      %507 = dma.done [#allocation3], 64
    $region29: #{tpu_custom_call.1} parent=1 // pred_fallthru
      _
    %508 = vsyncpa [#allocation3], 1

</llo_original>
